<compile_context>
chip_gen: v5e
topology: v5e:2x2
jax: 0.10.0
libtpu: 0.0.40
codegen_flags: <defaults>
</compile_context>

<pallas_src>
import math
from functools import partial

import jax
import jax.numpy as jnp
from jax.experimental import pallas as pl
from jax.experimental.pallas import tpu as pltpu

EPS = 1e-12  # matches torch.nn.functional.normalize default eps


def _round_up(x, m):
    return ((x + m - 1) // m) * m


def _ceil_div(a, b):
    return -(-a // b)


# ----------------------------------------------------------------------------
# Fused ArcFace head kernel.
#   x_ref     : (TM, K)  f32   raw features  (row-normalized in-kernel)
#   w_ref     : (K, TC)  f32   raw transposed weights (col-normalized in-kernel)
#   label_ref : (TM, 1)  i32   class labels (-1 on padded rows)
#   o_ref     : (TM, TC) f32   s * (one_hot * phi + (1 - one_hot) * cosine)
# ----------------------------------------------------------------------------
def _make_arc_kernel(cos_m, sin_m, th, mm, s, easy_margin, tc, mxu_bf16):
    def kernel(x_ref, w_ref, label_ref, o_ref):
        # Row-normalize features (rsqrt -> EUP slot, free vs. the VPU path).
        x = x_ref[...]
        x_n = x * jax.lax.rsqrt(
            jnp.maximum(jnp.sum(x * x, axis=-1, keepdims=True), EPS * EPS))

        # Column-normalize the weight block (K x TC, K = 128 -> cheap).
        w = w_ref[...]
        w_n = w * jax.lax.rsqrt(
            jnp.maximum(jnp.sum(w * w, axis=0, keepdims=True), EPS * EPS))

        if mxu_bf16:
            cosine = jnp.dot(x_n.astype(jnp.bfloat16), w_n.astype(jnp.bfloat16),
                             preferred_element_type=jnp.float32)
        else:
            cosine = jnp.dot(x_n, w_n, preferred_element_type=jnp.float32)

        # One-hot of the label inside this column tile: fold the tile offset
        # into the (TM, 1) label instead of adding it to a full-tile iota.
        lbl_local = label_ref[...] - pl.program_id(1) * tc          # (TM, 1)
        cols = jax.lax.broadcasted_iota(jnp.int32, cosine.shape, 1)  # (TM, TC)
        one_hot = cols == lbl_local                                  # (TM, TC)

        # cosine at the label column (0 if the label is not in this tile,
        # in which case one_hot is all-false and the delta is never applied).
        cos_lbl = jnp.sum(jnp.where(one_hot, cosine, 0.0),
                          axis=-1, keepdims=True)                    # (TM, 1)

        # Margin math only on the (TM, 1) label-column vector.
        sine = jnp.sqrt(jnp.maximum(1.0 - cos_lbl * cos_lbl, 0.0))
        phi = cos_lbl * cos_m - sine * sin_m
        if easy_margin:
            phi = jnp.where(cos_lbl > 0.0, phi, cos_lbl)
        else:
            phi = jnp.where(cos_lbl > th, phi, cos_lbl - mm)
        delta = (phi - cos_lbl) * s                                  # (TM, 1)

        # out = cosine*s everywhere, + (phi - cosine)*s at the label column.
        o_ref[...] = cosine * s + jnp.where(one_hot, delta, 0.0)

    return kernel


# ----------------------------------------------------------------------------
# Host wrapper
# ----------------------------------------------------------------------------
@partial(jax.jit,
         static_argnames=("s", "m", "sub", "easy_margin",
                          "tm_cap", "tc_cap", "mxu_bf16"))
def arc_margin_product(x, label, weight, *, s=32.0, m=0.5, sub=1,
                       easy_margin=False, tm_cap=1024, tc_cap=1024,
                       mxu_bf16=False):
    """ArcMarginProduct.forward(x, label).

    x: (N, in_features) f32, label: (N,) int,
    weight: (out_features * sub, in_features).  Returns (N, out_features) f32.
    """
    if sub != 1:
        # TODO(synk): sub > 1 (max over sub-centres before the margin) not implemented.
        raise NotImplementedError("sub > 1 is not supported by this kernel")

    N, K = x.shape
    C, K_w = weight.shape
    assert K == K_w, (K, K_w)

    # --- column tiling: lane-dense (multiple of 128), TC divides Cpad -------
    Cpad = _round_up(C, 128)
    n_ct = _ceil_div(Cpad, tc_cap)
    TC = _round_up(_ceil_div(Cpad, n_ct), 128)
    Cpad = TC * n_ct

    # --- row tiling: no padding blow-up; >= 2 tiles when N >= 16 so the grid
    #     can be sharded across v7x's two TensorCores --------------------------
    n_rt = max(_ceil_div(N, tm_cap), 2 if N >= 16 else 1)
    TM = _round_up(_ceil_div(N, n_rt), 8)
    Npad = TM * n_rt

    # --- host glue: pad to tile multiples (tiny copies for this head) -------
    x_p = x.astype(jnp.float32)
    if Npad != N:
        x_p = jnp.pad(x_p, ((0, Npad - N), (0, 0)))
    lab = label.astype(jnp.int32).reshape(N, 1)
    if Npad != N:
        lab = jnp.pad(lab, ((0, Npad - N), (0, 0)), constant_values=-1)
    w_t = weight.astype(jnp.float32).T                       # (K, C)
    if Cpad != C:
        w_t = jnp.pad(w_t, ((0, 0), (0, Cpad - C)))

    kernel = _make_arc_kernel(math.cos(m), math.sin(m),
                              math.cos(math.pi - m), math.sin(math.pi - m) * m,
                              s, easy_margin, TC, mxu_bf16)

    out = pl.pallas_call(
        kernel,
        out_shape=jax.ShapeDtypeStruct((Npad, Cpad), jnp.float32),
        grid=(n_rt, n_ct),
        in_specs=[
            pl.BlockSpec((TM, K), lambda i, j: (i, 0)),
            pl.BlockSpec((K, TC), lambda i, j: (0, j)),
            pl.BlockSpec((TM, 1), lambda i, j: (i, 0)),
        ],
        out_specs=pl.BlockSpec((TM, TC), lambda i, j: (i, j)),
        compiler_params=pltpu.CompilerParams(
            dimension_semantics=("parallel", "parallel")),
    )(x_p, w_t, lab)

    return out[:N, :C]


# ----------------------------------------------------------------------------
if __name__ == "__main__":
    N = 4
    in_features, out_features = 128, 200
    s, m, easy_margin = 32.0, 0.5, False

    key = jax.random.PRNGKey(0)
    kx, kw, kl = jax.random.split(key, 3)
    x = jax.random.normal(kx, (N, in_features), jnp.float32)
    bound = math.sqrt(6.0 / (in_features + out_features))     # xavier_uniform_
    weight = jax.random.uniform(kw, (out_features, in_features), jnp.float32,
                                -bound, bound)
    label = jax.random.randint(kl, (N,), 0, out_features, dtype=jnp.int32)

    out = arc_margin_product(x, label, weight, s=s, m=m, sub=1,
                             easy_margin=easy_margin)
    out = jax.block_until_ready(out)

    # pure-JAX reference (mirrors the PyTorch forward)
    xn = x / jnp.maximum(jnp.linalg.norm(x, axis=1, keepdims=True), EPS)
    wn = weight / jnp.maximum(jnp.linalg.norm(weight, axis=1, keepdims=True), EPS)
    cosine = jnp.dot(xn, wn.T, precision=jax.lax.Precision.HIGHEST)
    sine = jnp.sqrt(jnp.maximum(1.0 - cosine * cosine, 0.0))
    cos_m_v, sin_m_v = math.cos(m), math.sin(m)
    th_v, mm_v = math.cos(math.pi - m), math.sin(math.pi - m) * m
    phi = cosine * cos_m_v - sine * sin_m_v
    phi = jnp.where(cosine - th_v > 0, phi, cosine - mm_v)
    one_hot = jax.nn.one_hot(label, out_features, dtype=jnp.float32)
    ref = (one_hot * phi + (1.0 - one_hot) * cosine) * s

    assert out.shape == (N, out_features), out.shape
    assert bool(jnp.all(jnp.isfinite(out)))
    max_err = float(jnp.max(jnp.abs(out - ref)))
    assert bool(jnp.allclose(out, ref, atol=5e-2, rtol=1e-3)), max_err
    print("KERNEL_OK")
</pallas_src>

<mosaic_0001>
module attributes {stable_mosaic.version = 11 : i64} {
  func.func @kernel(%arg0: i32, %arg1: i32, %arg2: memref<8x128xf32, #tpu.memory_space<vmem>>, %arg3: memref<128x256xf32, #tpu.memory_space<vmem>>, %arg4: memref<8x1xi32, #tpu.memory_space<vmem>>, %arg5: memref<8x256xf32, #tpu.memory_space<vmem>>) attributes {dimension_semantics = [#tpu.dimension_semantics<parallel>, #tpu.dimension_semantics<parallel>], iteration_bounds = array<i64: 1, 1>, scalar_prefetch = 0 : i64, scratch_operands = 0 : i64, tpu.core_type = #tpu.core_type<tc>, window_params = [{transform_indices = @transform_0, window_bounds = array<i64: 8, 128>}, {transform_indices = @transform_1, window_bounds = array<i64: 128, 256>}, {transform_indices = @transform_2, window_bounds = array<i64: 8, 1>}, {transform_indices = @transform_3, window_bounds = array<i64: 8, 256>}]} {
    %c0 = arith.constant 0 : index
    %c0_0 = arith.constant 0 : index
    %0 = vector.load %arg2[%c0, %c0_0] : memref<8x128xf32, #tpu.memory_space<vmem>>, vector<8x128xf32>
    %1 = arith.mulf %0, %0 : vector<8x128xf32>
    %cst = arith.constant dense<0.000000e+00> : vector<8xf32>
    %2 = vector.multi_reduction <add>, %1, %cst [1] : vector<8x128xf32> to vector<8xf32>
    %3 = vector.shape_cast %2 : vector<8xf32> to vector<8x1xf32>
    %cst_1 = arith.constant 1.000000e-24 : f32
    %4 = vector.broadcast %cst_1 : f32 to vector<8x1xf32>
    %5 = arith.maximumf %3, %4 : vector<8x1xf32>
    %6 = math.rsqrt %5 : vector<8x1xf32>
    %7 = vector.broadcast %6 : vector<8x1xf32> to vector<8x128xf32>
    %8 = arith.mulf %0, %7 : vector<8x128xf32>
    %c0_2 = arith.constant 0 : index
    %c0_3 = arith.constant 0 : index
    %9 = vector.load %arg3[%c0_2, %c0_3] : memref<128x256xf32, #tpu.memory_space<vmem>>, vector<128x256xf32>
    %10 = arith.mulf %9, %9 : vector<128x256xf32>
    %cst_4 = arith.constant dense<0.000000e+00> : vector<256xf32>
    %11 = vector.multi_reduction <add>, %10, %cst_4 [0] : vector<128x256xf32> to vector<256xf32>
    %12 = vector.shape_cast %11 : vector<256xf32> to vector<1x256xf32>
    %cst_5 = arith.constant 1.000000e-24 : f32
    %13 = vector.broadcast %cst_5 : f32 to vector<1x256xf32>
    %14 = arith.maximumf %12, %13 : vector<1x256xf32>
    %15 = math.rsqrt %14 : vector<1x256xf32>
    %16 = vector.broadcast %15 : vector<1x256xf32> to vector<128x256xf32>
    %17 = arith.mulf %9, %16 : vector<128x256xf32>
    %cst_6 = arith.constant dense<0.000000e+00> : vector<8x256xf32>
    %18 = tpu.matmul %8, %17, %cst_6 {dimension_numbers = #tpu.dot_dimension_numbers<[1], [0], [0], [1], [0, 0, 1, 1], [], []>} : vector<8x128xf32>, vector<128x256xf32>, vector<8x256xf32> -> vector<8x256xf32>
    %c0_7 = arith.constant 0 : index
    %c0_8 = arith.constant 0 : index
    %19 = vector.load %arg4[%c0_7, %c0_8] : memref<8x1xi32, #tpu.memory_space<vmem>>, vector<8x1xi32>
    %c256_i32 = arith.constant 256 : i32
    %20 = arith.muli %arg1, %c256_i32 : i32
    %21 = vector.broadcast %20 : i32 to vector<8x1xi32>
    %22 = arith.subi %19, %21 : vector<8x1xi32>
    %23 = tpu.iota {dimensions = array<i32: 1>} : vector<8x256xi32>
    %24 = vector.broadcast %22 : vector<8x1xi32> to vector<8x256xi32>
    %25 = arith.cmpi eq, %23, %24 : vector<8x256xi32>
    %cst_9 = arith.constant 0.000000e+00 : f32
    %26 = vector.broadcast %cst_9 : f32 to vector<8x256xf32>
    %27 = arith.select %25, %18, %26 : vector<8x256xi1>, vector<8x256xf32>
    %cst_10 = arith.constant dense<0.000000e+00> : vector<8xf32>
    %28 = vector.multi_reduction <add>, %27, %cst_10 [1] : vector<8x256xf32> to vector<8xf32>
    %29 = vector.shape_cast %28 : vector<8xf32> to vector<8x1xf32>
    %30 = arith.mulf %29, %29 : vector<8x1xf32>
    %cst_11 = arith.constant 1.000000e+00 : f32
    %31 = vector.broadcast %cst_11 : f32 to vector<8x1xf32>
    %32 = arith.subf %31, %30 : vector<8x1xf32>
    %cst_12 = arith.constant 0.000000e+00 : f32
    %33 = vector.broadcast %cst_12 : f32 to vector<8x1xf32>
    %34 = arith.maximumf %32, %33 : vector<8x1xf32>
    %35 = math.sqrt %34 : vector<8x1xf32>
    %cst_13 = arith.constant 0.87758255 : f32
    %36 = vector.broadcast %cst_13 : f32 to vector<8x1xf32>
    %37 = arith.mulf %29, %36 : vector<8x1xf32>
    %cst_14 = arith.constant 0.47942555 : f32
    %38 = vector.broadcast %cst_14 : f32 to vector<8x1xf32>
    %39 = arith.mulf %35, %38 : vector<8x1xf32>
    %40 = arith.subf %37, %39 : vector<8x1xf32>
    %cst_15 = arith.constant -0.87758255 : f32
    %41 = vector.broadcast %cst_15 : f32 to vector<8x1xf32>
    %42 = arith.cmpf ogt, %29, %41 : vector<8x1xf32>
    %cst_16 = arith.constant 0.239712775 : f32
    %43 = vector.broadcast %cst_16 : f32 to vector<8x1xf32>
    %44 = arith.subf %29, %43 : vector<8x1xf32>
    %45 = arith.select %42, %40, %44 : vector<8x1xi1>, vector<8x1xf32>
    %46 = arith.subf %45, %29 : vector<8x1xf32>
    %cst_17 = arith.constant 3.200000e+01 : f32
    %47 = vector.broadcast %cst_17 : f32 to vector<8x1xf32>
    %48 = arith.mulf %46, %47 : vector<8x1xf32>
    %cst_18 = arith.constant 3.200000e+01 : f32
    %49 = vector.broadcast %cst_18 : f32 to vector<8x256xf32>
    %50 = arith.mulf %18, %49 : vector<8x256xf32>
    %cst_19 = arith.constant 0.000000e+00 : f32
    %51 = vector.shape_cast %48 : vector<8x1xf32> to vector<8x1xf32>
    %52 = vector.broadcast %51 : vector<8x1xf32> to vector<8x256xf32>
    %53 = vector.broadcast %cst_19 : f32 to vector<8x256xf32>
    %54 = arith.select %25, %52, %53 : vector<8x256xi1>, vector<8x256xf32>
    %55 = arith.addf %50, %54 : vector<8x256xf32>
    %c0_20 = arith.constant 0 : index
    %c0_21 = arith.constant 0 : index
    %56 = vector.load %arg5[%c0_20, %c0_21] : memref<8x256xf32, #tpu.memory_space<vmem>>, vector<8x256xf32>
    tpu.vector_store %arg5[%c0_20, %c0_21], %55 {strides = array<i32>} : memref<8x256xf32, #tpu.memory_space<vmem>>, vector<8x256xf32>,
    return
  }
  func.func @transform_0(%arg0: i32, %arg1: i32) -> (i32, i32) {
    %c0_i32 = arith.constant 0 : i32
    %c0_i32_0 = arith.constant 0 : i32
    return %arg0, %c0_i32 : i32, i32
  }
  func.func @transform_1(%arg0: i32, %arg1: i32) -> (i32, i32) {
    %c0_i32 = arith.constant 0 : i32
    %c0_i32_0 = arith.constant 0 : i32
    return %c0_i32, %arg1 : i32, i32
  }
  func.func @transform_2(%arg0: i32, %arg1: i32) -> (i32, i32) {
    %c0_i32 = arith.constant 0 : i32
    %c0_i32_0 = arith.constant 0 : i32
    return %arg0, %c0_i32 : i32, i32
  }
  func.func @transform_3(%arg0: i32, %arg1: i32) -> (i32, i32) {
    %c0_i32 = arith.constant 0 : i32
    return %arg0, %arg1 : i32, i32
  }
}

</mosaic_0001>

<llo_original>
// kernel: arc_margin_product.1
$region0: #{arc_margin_product.1}
  #allocation0 [shape = 'u32[]', space=smem, size = 0x4, offset = 0x4, fixed_abs, tag = 'smem constant byte address 0x4 - core index']
  #allocation1 [shape = 'u32[72,128]{1,0:T(1,128)}', space=vmem, size = 0x9000, scoped, tag = 'internal scratch']
  %s0 = inlined_call_operand.vmem [shape: f32[8,128], index: 0, kind: input, shape index: {}]
  %s1 = inlined_call_operand.vmem [shape: f32[128,256], index: 1, kind: input, shape index: {}]
  %s2 = inlined_call_operand.vmem [shape: s32[8,1], index: 2, kind: input, shape index: {}]
  %s3 = inlined_call_operand.vmem [shape: f32[8,256], index: 3, kind: output, shape index: {}]
  %s4 = sld [smem:[#allocation0]]
  $region22: #{arc_margin_product.1} parent=0
    _
  %s6 = ssub.s32 1, %s4
  %s7 = scalar_select 0, %s6, %s4
  // Predicated region
  $region2: #{arc_margin_product.1} parent=0 // pred_check
    _
  $region3: #{arc_margin_product.1} parent=0 // pred_check_branch
    %9 = sbr.rel (0) target = $region5
  $region4: #{arc_margin_product.1} parent=0 // pred_region
    _
  $region5: #{arc_margin_product.1} parent=0 // pred_fallthru
    _
  // Predicated region
  $region6: #{arc_margin_product.1} parent=0 // pred_check
    _
  $region7: #{arc_margin_product.1} parent=0 // pred_check_branch
    %11 = sbr.rel (0) target = $region9
  $region8: #{arc_margin_product.1} parent=0 // pred_region
    _
  $region9: #{arc_margin_product.1} parent=0 // pred_fallthru
    _
  // Predicated region
  $region10: #{arc_margin_product.1} parent=0 // pred_check
    _
  $region11: #{arc_margin_product.1} parent=0 // pred_check_branch
    %13 = sbr.rel (0) target = $region13
  $region12: #{arc_margin_product.1} parent=0 // pred_region
    _
  $region13: #{arc_margin_product.1} parent=0 // pred_fallthru
    _
  %v14 = vld [vmem:[%s0] sm:$0xff]
  %v15 = vmul.f32 %v14, %v14
  %16 = vadd.xlane.f32.xlu0 %v15
  %v17 = vpop.xlane.xlu0 %16
  %v18 = vmax.f32 %v17, 1e-24
  %v19 = vrsqrt.pop %v18
  %v20 = vmul.f32 %v19, %v18
  %v21 = vmul.f32 %v20, %v19
  %v22 = vmul.f32 0.5, %v21
  %v23 = vsub.f32 1.5, %v22
  %v24 = vmul.f32 %v19, %v23
  %vm25 = vweird.f32 %v18
  %vm26 = vweird.f32 %v19
  %vm27 = vmor %vm25, %vm26
  %v28 = vsel %vm27, %v19, %v24
  %v29 = vmul.f32 %v14, %v28
  %v30 = vld [vmem:[%s1] sm:$0xff]
  %v31 = vld [vmem:[%s1 + $0x8] sm:$0xff]
  %v32 = vld [vmem:[%s1 + $0x10] sm:$0xff]
  %v33 = vld [vmem:[%s1 + $0x18] sm:$0xff]
  %v34 = vld [vmem:[%s1 + $0x20] sm:$0xff]
  %v35 = vld [vmem:[%s1 + $0x28] sm:$0xff]
  %v36 = vld [vmem:[%s1 + $0x30] sm:$0xff]
  %v37 = vld [vmem:[%s1 + $0x38] sm:$0xff]
  %v38 = vld [vmem:[%s1 + $0x40] sm:$0xff]
  %v39 = vld [vmem:[%s1 + $0x48] sm:$0xff]
  %v40 = vld [vmem:[%s1 + $0x50] sm:$0xff]
  %v41 = vld [vmem:[%s1 + $0x58] sm:$0xff]
  %v42 = vld [vmem:[%s1 + $0x60] sm:$0xff]
  %v43 = vld [vmem:[%s1 + $0x68] sm:$0xff]
  %v44 = vld [vmem:[%s1 + $0x70] sm:$0xff]
  %v45 = vld [vmem:[%s1 + $0x78] sm:$0xff]
  %v46 = vld [vmem:[%s1 + $0x80] sm:$0xff]
  %v47 = vld [vmem:[%s1 + $0x88] sm:$0xff]
  %v48 = vld [vmem:[%s1 + $0x90] sm:$0xff]
  %v49 = vld [vmem:[%s1 + $0x98] sm:$0xff]
  %v50 = vld [vmem:[%s1 + $0xa0] sm:$0xff]
  %v51 = vld [vmem:[%s1 + $0xa8] sm:$0xff]
  %v52 = vld [vmem:[%s1 + $0xb0] sm:$0xff]
  %v53 = vld [vmem:[%s1 + $0xb8] sm:$0xff]
  %v54 = vld [vmem:[%s1 + $0xc0] sm:$0xff]
  %v55 = vld [vmem:[%s1 + $0xc8] sm:$0xff]
  %v56 = vld [vmem:[%s1 + $0xd0] sm:$0xff]
  %v57 = vld [vmem:[%s1 + $0xd8] sm:$0xff]
  %v58 = vld [vmem:[%s1 + $0xe0] sm:$0xff]
  %v59 = vld [vmem:[%s1 + $0xe8] sm:$0xff]
  %v60 = vld [vmem:[%s1 + $0xf0] sm:$0xff]
  %v61 = vld [vmem:[%s1 + $0xf8] sm:$0xff]
  %v62 = vmul.f32 %v30, %v30
  %v63 = vmul.f32 %v31, %v31
  %v64 = vmul.f32 %v32, %v32
  %v65 = vmul.f32 %v33, %v33
  %v66 = vmul.f32 %v34, %v34
  %v67 = vmul.f32 %v35, %v35
  %v68 = vmul.f32 %v36, %v36
  %v69 = vmul.f32 %v37, %v37
  %v70 = vmul.f32 %v38, %v38
  %v71 = vmul.f32 %v39, %v39
  %v72 = vmul.f32 %v40, %v40
  %v73 = vmul.f32 %v41, %v41
  %v74 = vmul.f32 %v42, %v42
  %v75 = vmul.f32 %v43, %v43
  %v76 = vmul.f32 %v44, %v44
  %v77 = vmul.f32 %v45, %v45
  %v78 = vmul.f32 %v46, %v46
  %v79 = vmul.f32 %v47, %v47
  %v80 = vmul.f32 %v48, %v48
  %v81 = vmul.f32 %v49, %v49
  %v82 = vmul.f32 %v50, %v50
  %v83 = vmul.f32 %v51, %v51
  %v84 = vmul.f32 %v52, %v52
  %v85 = vmul.f32 %v53, %v53
  %v86 = vmul.f32 %v54, %v54
  %v87 = vmul.f32 %v55, %v55
  %v88 = vmul.f32 %v56, %v56
  %v89 = vmul.f32 %v57, %v57
  %v90 = vmul.f32 %v58, %v58
  %v91 = vmul.f32 %v59, %v59
  %v92 = vmul.f32 %v60, %v60
  %v93 = vmul.f32 %v61, %v61
  %v94 = vadd.f32 %v62, %v64
  %v95 = vadd.f32 %v94, %v66
  %v96 = vadd.f32 %v95, %v68
  %v97 = vadd.f32 %v96, %v70
  %v98 = vadd.f32 %v97, %v72
  %v99 = vadd.f32 %v98, %v74
  %v100 = vadd.f32 %v99, %v76
  %v101 = vadd.f32 %v100, %v78
  %v102 = vadd.f32 %v101, %v80
  %v103 = vadd.f32 %v102, %v82
  %v104 = vadd.f32 %v103, %v84
  %v105 = vadd.f32 %v104, %v86
  %v106 = vadd.f32 %v105, %v88
  %v107 = vadd.f32 %v106, %v90
  %v108 = vadd.f32 %v107, %v92
  %v109 = vrot.slane %v108, 4
  %v110 = vadd.f32 %v108, %v109
  %v111 = vrot.slane %v110, 2
  %v112 = vadd.f32 %v110, %v111
  %v113 = vrot.slane %v112, 1
  %v114 = vadd.f32 %v112, %v113
  %v115 = vadd.f32 %v63, %v65
  %v116 = vadd.f32 %v115, %v67
  %v117 = vadd.f32 %v116, %v69
  %v118 = vadd.f32 %v117, %v71
  %v119 = vadd.f32 %v118, %v73
  %v120 = vadd.f32 %v119, %v75
  %v121 = vadd.f32 %v120, %v77
  %v122 = vadd.f32 %v121, %v79
  %v123 = vadd.f32 %v122, %v81
  %v124 = vadd.f32 %v123, %v83
  %v125 = vadd.f32 %v124, %v85
  %v126 = vadd.f32 %v125, %v87
  %v127 = vadd.f32 %v126, %v89
  %v128 = vadd.f32 %v127, %v91
  %v129 = vadd.f32 %v128, %v93
  %v130 = vrot.slane %v129, 4
  %v131 = vadd.f32 %v129, %v130
  %v132 = vrot.slane %v131, 2
  %v133 = vadd.f32 %v131, %v132
  %v134 = vrot.slane %v133, 1
  %v135 = vadd.f32 %v133, %v134
  %v136 = vmax.f32 %v114, 1e-24
  %v137 = vmax.f32 %v135, 1e-24
  %v138 = vrsqrt.pop %v136
  %v139 = vmul.f32 %v138, %v136
  %v140 = vmul.f32 %v139, %v138
  %v141 = vmul.f32 0.5, %v140
  %v142 = vsub.f32 1.5, %v141
  %v143 = vmul.f32 %v138, %v142
  %vm144 = vweird.f32 %v136
  %vm145 = vweird.f32 %v138
  %vm146 = vmor %vm144, %vm145
  %v147 = vsel %vm146, %v138, %v143
  %v148 = vrsqrt.pop %v137
  %v149 = vmul.f32 %v148, %v137
  %v150 = vmul.f32 %v149, %v148
  %v151 = vmul.f32 0.5, %v150
  %v152 = vsub.f32 1.5, %v151
  %v153 = vmul.f32 %v148, %v152
  %vm154 = vweird.f32 %v137
  %vm155 = vweird.f32 %v148
  %vm156 = vmor %vm154, %vm155
  %v157 = vsel %vm156, %v148, %v153
  %v158 = vmul.f32 %v30, %v147
  %v159 = vmul.f32 %v31, %v157
  %v160 = vmul.f32 %v32, %v147
  %v161 = vmul.f32 %v33, %v157
  %v162 = vmul.f32 %v34, %v147
  %v163 = vmul.f32 %v35, %v157
  %v164 = vmul.f32 %v36, %v147
  %v165 = vmul.f32 %v37, %v157
  %v166 = vmul.f32 %v38, %v147
  %v167 = vmul.f32 %v39, %v157
  %v168 = vmul.f32 %v40, %v147
  %v169 = vmul.f32 %v41, %v157
  %v170 = vmul.f32 %v42, %v147
  %v171 = vmul.f32 %v43, %v157
  %v172 = vmul.f32 %v44, %v147
  %v173 = vmul.f32 %v45, %v157
  %v174 = vmul.f32 %v46, %v147
  %v175 = vmul.f32 %v47, %v157
  %v176 = vmul.f32 %v48, %v147
  %v177 = vmul.f32 %v49, %v157
  %v178 = vmul.f32 %v50, %v147
  %v179 = vmul.f32 %v51, %v157
  %v180 = vmul.f32 %v52, %v147
  %v181 = vmul.f32 %v53, %v157
  %v182 = vmul.f32 %v54, %v147
  %v183 = vmul.f32 %v55, %v157
  %v184 = vmul.f32 %v56, %v147
  %v185 = vmul.f32 %v57, %v157
  %v186 = vmul.f32 %v58, %v147
  %v187 = vmul.f32 %v59, %v157
  %v188 = vmul.f32 %v60, %v147
  %v189 = vmul.f32 %v61, %v157
  %190 = vmatpush.msra.mxu0 %v188
  %191 = vmatpush.msra.mxu0 %v186
  %192 = vmatpush.msra.mxu0 %v184
  %193 = vmatpush.msra.mxu0 %v182
  %194 = vmatpush.msra.mxu0 %v180
  %195 = vmatpush.msra.mxu0 %v178
  %196 = vmatpush.msra.mxu0 %v176
  %197 = vmatpush.msra.mxu0 %v174
  %198 = vmatpush.msra.mxu0 %v172
  %199 = vmatpush.msra.mxu0 %v170
  %200 = vmatpush.msra.mxu0 %v168
  %201 = vmatpush.msra.mxu0 %v166
  %202 = vmatpush.msra.mxu0 %v164
  %203 = vmatpush.msra.mxu0 %v162
  %204 = vmatpush.msra.mxu0 %v160
  %205 = vmatpush.msra.mxu0 %v158
  %206 = vmatmul.f32.gmra.mxu0 %v29
  %v207 = vpop.f32.mrf.mxu0
  %v208 = vadd.f32 0.0, %v207
  %209 = vdwg.mxu0
  %210 = vmatpush.msra.mxu0 %v189
  %211 = vmatpush.msra.mxu0 %v187
  %212 = vmatpush.msra.mxu0 %v185
  %213 = vmatpush.msra.mxu0 %v183
  %214 = vmatpush.msra.mxu0 %v181
  %215 = vmatpush.msra.mxu0 %v179
  %216 = vmatpush.msra.mxu0 %v177
  %217 = vmatpush.msra.mxu0 %v175
  %218 = vmatpush.msra.mxu0 %v173
  %219 = vmatpush.msra.mxu0 %v171
  %220 = vmatpush.msra.mxu0 %v169
  %221 = vmatpush.msra.mxu0 %v167
  %222 = vmatpush.msra.mxu0 %v165
  %223 = vmatpush.msra.mxu0 %v163
  %224 = vmatpush.msra.mxu0 %v161
  %225 = vmatpush.msra.mxu0 %v159
  %226 = vmatmul.f32.gmra.mxu0 %v29
  %v227 = vpop.f32.mrf.mxu0
  %v228 = vadd.f32 0.0, %v227
  %229 = vdwg.mxu0
  %v230 = vld [vmem:[%s2] sm:$0xff]
  %s231 = smul.u32 0, 256
  %v232 = vstv %s231
  %v233 = vsub.s32 %v230, %v232
  %v234 = vlaneseq
  %v235 = vand.u32 %v234, 127
  %v236 = vadd.s32 %v235, 128
  %237 = vset.pattern.permute.xlu0 0
  %238 = vperm.xlu0 %237, %v233
  %v239 = vpop.permute.xlu0 %238
  %vm240 = vcmp.eq.s32.totalorder %v235, %v239
  %vm241 = vcmp.eq.s32.totalorder %v236, %v239
  %v242 = vsel %vm240, %v208, 0.0
  %v243 = vsel %vm241, %v228, 0.0
  %v244 = vadd.f32 %v242, %v243
  %245 = vadd.xlane.f32.xlu0 %v244
  %v246 = vpop.xlane.xlu0 %245
  %v247 = vmul.f32 %v246, %v246
  %v248 = vsub.f32 1.0, %v247
  %v249 = vmax.f32 %v248, 0.0
  %v250 = vrsqrt.pop %v249
  %v251 = vmul.f32 %v250, %v249
  %v252 = vmul.f32 %v251, %v250
  %v253 = vmul.f32 0.5, %v252
  %v254 = vsub.f32 1.5, %v253
  %v255 = vmul.f32 %v250, %v254
  %v256 = vmul.f32 %v249, %v255
  %vm257 = vcmp.eq.f32.partialorder %v249, inf
  %v258 = vsel %vm257, %v249, %v256
  %vm259 = vcmp.eq.f32.partialorder %v249, 0.0
  %v260 = vand.u32 %v249, 2147483648
  %v261 = vsel %vm259, %v260, %v258
  %v262 = vmul.f32 %v246, 0.87758255
  %v263 = vmul.f32 %v261, 0.47942555
  %v264 = vsub.f32 %v262, %v263
  %vm265 = vcmp.gt.f32.partialorder %v246, -0.87758255
  %v266 = vsub.f32 %v246, 0.23971277
  %v267 = vsel %vm265, %v264, %v266
  %v268 = vsub.f32 %v267, %v246
  %v269 = vmul.f32 %v268, 32.0
  %v270 = vmul.f32 %v208, 32.0
  %v271 = vmul.f32 %v228, 32.0
  %v272 = vsel %vm240, %v269, 0.0
  %v273 = vsel %vm241, %v269, 0.0
  %v274 = vadd.f32 %v270, %v272
  %v275 = vadd.f32 %v271, %v273
  %276 = vst [vmem:[%s3] sm:$0xff] %v274
  %277 = vst [vmem:[%s3 + $0x8] sm:$0xff] %v275
  // Predicated region
  $region14: #{arc_margin_product.1} parent=0 // pred_check
    _
  $region15: #{arc_margin_product.1} parent=0 // pred_check_branch
    %279 = sbr.rel (0) target = $region17
  $region16: #{arc_margin_product.1} parent=0 // pred_region
    _
  $region17: #{arc_margin_product.1} parent=0 // pred_fallthru
    _
  // Predicated region
  $region18: #{arc_margin_product.1} parent=0 // pred_check
    _
  $region19: #{arc_margin_product.1} parent=0 // pred_check_branch
    %281 = sbr.rel (0) target = $region21
  $region20: #{arc_margin_product.1} parent=0 // pred_region
    _
  $region21: #{arc_margin_product.1} parent=0 // pred_fallthru
    _

</llo_original>
